<compile_context>
chip_gen: v5e
topology: v5e:2x2
jax: 0.10.0
libtpu: 0.0.40
codegen_flags: <defaults>
</compile_context>

<pallas_src>
import functools
import math

import jax
import jax.numpy as jnp
from jax import lax
from jax.experimental import pallas as pl
from jax.experimental.pallas import tpu as pltpu

# ----------------------------- configuration -------------------------------
NUM_HIDDEN = 32          # num_hidden (constructor arg of the module)
NUM_INDUCING = 128       # num_inducing
NUM_CLASSES = 1          # num_classes
OUT_PAD = 8              # narrow lane pad for the GP-output block
LAYER_NORM_EPS = 1e-12
GP_COV_MOMENTUM = 0.999  # momentum > 0 branch of update_cov
GP_COV_RIDGE = 0.001
NORMALIZE_INPUT = True
SCALE_RANDOM_FEATURES = False
WFE_RESIDENT_MAX_BYTES = 8 * 1024 * 1024   # keep W_fe fully VMEM-resident below this


# --------------------------- hardware-aware limits ---------------------------
def _vmem_limit_bytes():
    """Scoped-VMEM limit derived from the chip (v7x: 64 MiB phys, v5e/v6e: 128)."""
    cap = 64 * 1024 * 1024
    try:
        info = pltpu.get_tpu_info()
        cap = int(getattr(info, "vmem_capacity_bytes", cap))
    except Exception:
        pass
    return max(16 * 1024 * 1024, min(cap // 2, 64 * 1024 * 1024))


def _tile_options(total, candidates):
    """Descending candidate tiles that divide `total`; fall back to the full dim."""
    opts = [c for c in candidates if c <= total and total % c == 0]
    return opts if opts else [total]


def _fwd_vmem_bytes(tb, tk, d_in, wfe_resident):
    H, M = NUM_HIDDEN, NUM_INDUCING
    x_bytes = 3 * tb * tk * 4                        # f32 x tiles, Buffered(3)
    wfe_bytes = 2 * (d_in if wfe_resident else tk) * H * 2
    out_bytes = 2 * tb * (M + OUT_PAD) * 4           # phi + gp_output blocks
    scratch = tb * H * 4                             # FE accumulator
    consts = 2 * (4 * H + H * M + 2 * M + OUT_PAD * (M + 1)) * 4
    return x_bytes + wfe_bytes + out_bytes + scratch + consts


def _pick_fwd_tiles(batch, d_in, wfe_resident, budget):
    tb_opts = _tile_options(batch, (1024, 512, 256, 128, 64, 32, 16, 8))
    tk_opts = _tile_options(d_in, (4096, 2048, 1024, 512, 256, 128))
    best = None
    for tb in tb_opts:
        for tk in tk_opts:
            if _fwd_vmem_bytes(tb, tk, d_in, wfe_resident) <= budget:
                score = (tb * tk, tk)
                if best is None or score > best[0]:
                    best = (score, tb, tk)
    if best is None:
        return tb_opts[-1], tk_opts[-1]
    return best[1], best[2]


def _cov_vmem_bytes(tbi, tbj, M):
    return (2 * tbi * M * 4 + 2 * tbj * M * 4 + 2 * M * M * 4
            + 2 * tbi * tbj * 4 + tbi * M * 4)


def _pick_cov_tiles(batch, M, budget):
    tbi_opts = _tile_options(batch, (512, 256, 128, 64, 32, 16, 8))
    tbj_opts = _tile_options(batch, (2048, 1024, 512, 256, 128))
    best = None
    for tbi in tbi_opts:
        for tbj in tbj_opts:
            if _cov_vmem_bytes(tbi, tbj, M) <= budget:
                score = (tbi * tbj, tbj)
                if best is None or score > best[0]:
                    best = (score, tbi, tbj)
    if best is None:
        return tbi_opts[-1], tbj_opts[-1]
    return best[1], best[2]


# ------------------------------ kernel bodies ------------------------------
def laplace_fwd_kernel(x_ref, wfe_ref, bfe_ref, ln_g_ref, ln_b_ref,
                       wrff_ref, brff_ref, wout_ref, bout_ref,
                       out_ref, phi_ref, f_acc,
                       *, tk, eps, normalize_input, scale_random_features,
                       num_inducing, wfe_resident):
    ki = pl.program_id(1)            # D_in (K) tile index, innermost reduction
    nk = pl.num_programs(1)

    # init the feature-extractor accumulator at the start of every batch tile
    @pl.when(ki == 0)
    def _init_f():
        f_acc[...] = jnp.zeros_like(f_acc)

    # feature extractor Linear(D_in -> H): x arrives f32 from HBM and is cast
    # to bf16 in VMEM (VPU work hidden under the DMA); f32 MXU accumulation.
    x_tile = x_ref[...].astype(jnp.bfloat16)
    if wfe_resident:
        start = pl.multiple_of(ki * tk, tk)
        w_tile = wfe_ref[pl.ds(start, tk), :]          # resident W_fe, sliced
    else:
        w_tile = wfe_ref[...]                          # streamed (tk, H) block
    f_acc[...] += jnp.dot(x_tile, w_tile, preferred_element_type=jnp.float32)

    # everything downstream of the FE matmul runs once per batch tile
    @pl.when(ki == nk - 1)
    def _finish_tile():
        f = f_acc[...] + bfe_ref[...]

        if normalize_input:
            # two-pass LayerNorm statistics (no cancellation -> var >= 0)
            mu = jnp.mean(f, axis=-1, keepdims=True)
            var = jnp.mean((f - mu) * (f - mu), axis=-1, keepdims=True)
            f = (f - mu) * lax.rsqrt(var + eps)
            f = f * ln_g_ref[...] + ln_b_ref[...]

        # RandomFourierFeatures(H -> M) + cos (f32)
        lin = jnp.dot(f, wrff_ref[...], preferred_element_type=jnp.float32)
        phi = jnp.cos(lin + brff_ref[...])
        if scale_random_features:
            phi = phi * math.sqrt(2.0 / float(num_inducing))
        phi_ref[...] = phi

        # GP output layer on a narrow (M, OUT_PAD) slab; sliced to C outside.
        out = jnp.dot(phi, wout_ref[...], preferred_element_type=jnp.float32)
        out_ref[...] = out + bout_ref[...]


def precision_kernel(phi_ref, prec_ref, prec_new_ref, acc_ref,
                     *, batch_size, momentum):
    i = pl.program_id(0)

    @pl.when(i == 0)
    def _init():
        acc_ref[...] = jnp.zeros_like(acc_ref)

    # phi^T @ phi without materializing a transpose: contract the batch dim.
    acc_ref[...] += lax.dot_general(
        phi_ref[...], phi_ref[...],
        dimension_numbers=(((0,), (0,)), ((), ())),
        preferred_element_type=jnp.float32)

    @pl.when(i == pl.num_programs(0) - 1)
    def _finalize():
        if momentum > 0.0:
            pm = acc_ref[...] * (1.0 / float(batch_size))
            prec_new_ref[...] = momentum * prec_ref[...] + (1.0 - momentum) * pm
        else:
            prec_new_ref[...] = prec_ref[...] + acc_ref[...]


def cov_kernel(phi_i_ref, phi_j_ref, invp_ref, cov_ref, tmp_ref, *, ridge):
    # tmp = ridge * phi_i @ inv(P): computed once per row tile (ridge folded
    # here -> B*M multiplies instead of B^2 on the output-store path).
    @pl.when(pl.program_id(1) == 0)
    def _compute_tmp():
        tmp_ref[...] = ridge * jnp.dot(phi_i_ref[...], invp_ref[...],
                                       preferred_element_type=jnp.float32)

    # cov = tmp @ phi_j^T — transposed-RHS dot_general, no XLU transpose.
    cov_ref[...] = lax.dot_general(
        tmp_ref[...], phi_j_ref[...],
        dimension_numbers=(((1,), (1,)), ((), ())),
        preferred_element_type=jnp.float32)


# ------------------------------ wrappers ------------------------------------
def update_precision(phi, precision_old, *, vmem_limit=None):
    B, M = phi.shape
    if vmem_limit is None:
        vmem_limit = _vmem_limit_bytes()
    tbp = _tile_options(B, (512, 256, 128, 64, 32, 16, 8))[0]

    return pl.pallas_call(
        functools.partial(precision_kernel, batch_size=B,
                          momentum=GP_COV_MOMENTUM),
        out_shape=jax.ShapeDtypeStruct((M, M), jnp.float32),
        grid=(B // tbp,),
        in_specs=[
            pl.BlockSpec((tbp, M), lambda i: (i, 0)),       # phi batch block
            pl.BlockSpec((M, M), lambda i: (0, 0)),         # old precision
        ],
        out_specs=pl.BlockSpec((M, M), lambda i: (0, 0)),
        scratch_shapes=[pltpu.VMEM((M, M), jnp.float32)],
        compiler_params=pltpu.CompilerParams(
            dimension_semantics=("arbitrary",),             # reduces over batch
            vmem_limit_bytes=vmem_limit),
        cost_estimate=pl.CostEstimate(
            flops=2 * B * M * M, transcendentals=0,
            bytes_accessed=B * M * 4 + 2 * M * M * 4),
    )(phi, precision_old)


def compute_predictive_covariance(phi, precision_new, *, tbi=None, tbj=None,
                                  vmem_limit=None):
    B, M = phi.shape
    if vmem_limit is None:
        vmem_limit = _vmem_limit_bytes()
    budget = int(0.75 * vmem_limit)

    # TODO(synk): torch.linalg.inv has no Pallas equivalent; inverse stays in JAX.
    inv_p = jnp.linalg.inv(precision_new)

    atbi, atbj = _pick_cov_tiles(B, M, budget)
    tbi = atbi if tbi is None else tbi
    tbj = atbj if tbj is None else tbj
    assert B % tbi == 0 and B % tbj == 0, (B, tbi, tbj)

    return pl.pallas_call(
        functools.partial(cov_kernel, ridge=GP_COV_RIDGE),
        out_shape=jax.ShapeDtypeStruct((B, B), jnp.float32),
        grid=(B // tbi, B // tbj),
        in_specs=[
            pl.BlockSpec((tbi, M), lambda i, j: (i, 0)),   # phi row block (i)
            pl.BlockSpec((tbj, M), lambda i, j: (j, 0)),   # phi row block (j)
            pl.BlockSpec((M, M), lambda i, j: (0, 0)),     # inv(P), resident
        ],
        out_specs=pl.BlockSpec((tbi, tbj), lambda i, j: (i, j)),
        scratch_shapes=[pltpu.VMEM((tbi, M), jnp.float32)],
        compiler_params=pltpu.CompilerParams(
            dimension_semantics=("parallel", "arbitrary"),
            vmem_limit_bytes=vmem_limit),
        cost_estimate=pl.CostEstimate(
            flops=2 * B * M * M + 2 * B * B * M,
            transcendentals=0,
            bytes_accessed=2 * B * M * 4 + M * M * 4 + B * B * 4),
    )(phi, phi, inv_p)


def laplace_forward(x_nchw, params, precision_matrix, *, return_gp_cov=False,
                    update_cov=True, tb=None, tk=None, cov_row_tile=None):
    B = x_nchw.shape[0]
    x_flat = x_nchw.reshape(B, -1)                    # NCHW -> [B, C*H*W], f32
    d_in = x_flat.shape[1]
    H, M, C = NUM_HIDDEN, NUM_INDUCING, NUM_CLASSES

    vmem_limit = _vmem_limit_bytes()
    budget = int(0.75 * vmem_limit)

    # keep W_fe fully VMEM-resident (read from HBM once) when it is small
    wfe_resident = d_in * H * 2 <= WFE_RESIDENT_MAX_BYTES

    if tb is None or tk is None:
        atb, atk = _pick_fwd_tiles(B, d_in, wfe_resident, budget)
        tb = atb if tb is None else tb
        tk = atk if tk is None else tk
    assert B % tb == 0 and d_in % tk == 0, (B, tb, d_in, tk)
    nb, nk = B // tb, d_in // tk

    # small one-time weight casts / pads (negligible HBM traffic). The big x
    # tensor stays f32 in HBM and is cast to bf16 per tile *inside* the kernel,
    # which avoids a standalone astype pass over the dominant tensor.
    # NOTE: the bf16 FE matmul is an intentional accuracy trade vs the f32
    # torch module (the reference below mirrors it).
    w_fe_bf = params["w_fe"].astype(jnp.bfloat16)
    w_out_pad = jnp.zeros((M, OUT_PAD), jnp.float32).at[:, :C].set(params["w_out"])
    b_out_pad = jnp.zeros((1, OUT_PAD), jnp.float32).at[:, :C].set(params["b_out"])

    if wfe_resident:
        wfe_spec = pl.BlockSpec((d_in, H), lambda b, k: (0, 0))   # resident
    else:
        wfe_spec = pl.BlockSpec((tk, H), lambda b, k: (k, 0))     # streamed

    # deeper x buffering hides the per-batch-tile epilogue behind the DMA stream
    x_pipeline = pl.Buffered(3) if nb * nk >= 3 else None

    kern = functools.partial(
        laplace_fwd_kernel,
        tk=tk, eps=LAYER_NORM_EPS, normalize_input=NORMALIZE_INPUT,
        scale_random_features=SCALE_RANDOM_FEATURES, num_inducing=M,
        wfe_resident=wfe_resident)

    flops = 2 * B * (d_in * H + H * M + M * OUT_PAD)
    bytes_accessed = (B * d_in * 4
                      + d_in * H * 2 * (1 if wfe_resident else nb)
                      + (4 * H + H * M + 2 * M + OUT_PAD * (M + 1)) * 4
                      + B * (M + OUT_PAD) * 4)

    out_pad, gp_feature = pl.pallas_call(
        kern,
        out_shape=(
            jax.ShapeDtypeStruct((B, OUT_PAD), jnp.float32),  # padded gp_output
            jax.ShapeDtypeStruct((B, M), jnp.float32),        # gp_feature (phi)
        ),
        grid=(nb, nk),
        in_specs=[
            pl.BlockSpec((tb, tk), lambda b, k: (b, k),
                         pipeline_mode=x_pipeline),            # x (f32)
            wfe_spec,                                          # w_fe (bf16)
            pl.BlockSpec((1, H), lambda b, k: (0, 0)),         # b_fe
            pl.BlockSpec((1, H), lambda b, k: (0, 0)),         # ln gamma
            pl.BlockSpec((1, H), lambda b, k: (0, 0)),         # ln beta
            pl.BlockSpec((H, M), lambda b, k: (0, 0)),         # w_rff
            pl.BlockSpec((1, M), lambda b, k: (0, 0)),         # b_rff
            pl.BlockSpec((M, OUT_PAD), lambda b, k: (0, 0)),   # w_out (padded)
            pl.BlockSpec((1, OUT_PAD), lambda b, k: (0, 0)),   # b_out (padded)
        ],
        out_specs=[
            pl.BlockSpec((tb, OUT_PAD), lambda b, k: (b, 0)),
            pl.BlockSpec((tb, M), lambda b, k: (b, 0)),
        ],
        scratch_shapes=[
            pltpu.VMEM((tb, H), jnp.float32),   # FE-matmul K accumulator
        ],
        compiler_params=pltpu.CompilerParams(
            # batch axis is embarrassingly parallel now (no cross-batch-tile
            # accumulator in this kernel) -> both TensorCores on v7x.
            dimension_semantics=("parallel", "arbitrary"),
            vmem_limit_bytes=vmem_limit),
        cost_estimate=pl.CostEstimate(
            flops=flops, transcendentals=B * M, bytes_accessed=bytes_accessed),
    )(x_flat, w_fe_bf, params["b_fe"], params["ln_g"], params["ln_b"],
      params["w_rff"], params["b_rff"], w_out_pad, b_out_pad)

    gp_output = out_pad[:, :C]

    if update_cov:
        precision_new = update_precision(gp_feature, precision_matrix,
                                         vmem_limit=vmem_limit)
    else:
        precision_new = precision_matrix

    if not return_gp_cov:
        return gp_output, gp_feature, precision_new

    gp_cov = compute_predictive_covariance(gp_feature, precision_new,
                                           tbi=cov_row_tile,
                                           vmem_limit=vmem_limit)
    return gp_output, gp_cov, gp_feature, precision_new


# ------------------------- deterministic parameters -------------------------
def init_params(key, d_in):
    ks = jax.random.split(key, 6)
    H, M, C = NUM_HIDDEN, NUM_INDUCING, NUM_CLASSES
    return {
        # feature extractor Linear(D_in -> H)
        "w_fe": jax.random.normal(ks[0], (d_in, H), jnp.float32) / math.sqrt(d_in),
        "b_fe": jnp.zeros((1, H), jnp.float32),
        # LayerNorm(H) default init
        "ln_g": jnp.ones((1, H), jnp.float32),
        "ln_b": jnp.zeros((1, H), jnp.float32),
        # RandomFourierFeatures: W ~ N(0,1), b ~ U(0, 2*pi) (fixed projection)
        "w_rff": jax.random.normal(ks[1], (H, M), jnp.float32),
        "b_rff": jax.random.uniform(ks[2], (1, M), jnp.float32, 0.0, 2.0 * math.pi),
        # gp output Linear(M -> C)
        "w_out": jax.random.normal(ks[3], (M, C), jnp.float32) / math.sqrt(M),
        "b_out": jnp.zeros((1, C), jnp.float32),
    }


def reference_forward(x_nchw, params, precision_matrix):
    B = x_nchw.shape[0]
    x = x_nchw.reshape(B, -1).astype(jnp.float32)
    # Match the kernel's mixed-precision policy (bf16 inputs to the big FE
    # matmul, f32 accumulation) so the check isolates kernel structure.
    xb = x.astype(jnp.bfloat16).astype(jnp.float32)
    wb = params["w_fe"].astype(jnp.bfloat16).astype(jnp.float32)
    f = xb @ wb + params["b_fe"]
    if NORMALIZE_INPUT:
        mu = f.mean(-1, keepdims=True)
        var = ((f - mu) ** 2).mean(-1, keepdims=True)
        f = (f - mu) / jnp.sqrt(var + LAYER_NORM_EPS) * params["ln_g"] + params["ln_b"]
    phi = jnp.cos(f @ params["w_rff"] + params["b_rff"])
    if SCALE_RANDOM_FEATURES:
        phi = phi * math.sqrt(2.0 / float(NUM_INDUCING))
    out = phi @ params["w_out"] + params["b_out"]
    if GP_COV_MOMENTUM > 0.0:
        pm = (phi.T @ phi) / B
        p_new = GP_COV_MOMENTUM * precision_matrix + (1.0 - GP_COV_MOMENTUM) * pm
    else:
        p_new = precision_matrix + phi.T @ phi
    cov = phi @ (jnp.linalg.inv(p_new) @ phi.T) * GP_COV_RIDGE
    return out, phi, p_new, cov


# ----------------------------------- main ------------------------------------
def _run_case(name, key, *, batch, chan, spatial, tb=None, tk=None,
              cov_row_tile=None):
    kx, kp = jax.random.split(key)
    x = jax.random.normal(kx, (batch, chan, spatial, spatial), jnp.float32)
    d_in = chan * spatial * spatial
    params = init_params(kp, d_in)
    precision = GP_COV_RIDGE * jnp.eye(NUM_INDUCING, dtype=jnp.float32)

    r_out, r_phi, r_prec, r_cov = reference_forward(x, params, precision)

    gp_out, gp_cov, gp_feat, prec_new = laplace_forward(
        x, params, precision, return_gp_cov=True,
        tb=tb, tk=tk, cov_row_tile=cov_row_tile)
    jax.block_until_ready((gp_out, gp_cov, gp_feat, prec_new))

    assert jnp.allclose(gp_out, r_out, atol=1e-2, rtol=1e-2), name
    assert jnp.allclose(gp_feat, r_phi, atol=1e-2, rtol=1e-2), name
    assert jnp.allclose(prec_new, r_prec, atol=1e-2, rtol=1e-2), name
    assert jnp.allclose(gp_cov, r_cov, atol=2e-2, rtol=2e-2), name


if __name__ == "__main__":
    root = jax.random.PRNGKey(0)
    k1, k2 = jax.random.split(root)

    # tiny case matching the module example (auto-picked tiles, grid (1, 1))
    _run_case("small", k1, batch=2, chan=4, spatial=16)

    # larger case exercising multi-tile batch + K grids, the batch-tiled
    # precision-update kernel, and the tiled covariance kernel
    _run_case("tiled", k2, batch=64, chan=4, spatial=16,
              tb=32, tk=256, cov_row_tile=32)

    print("KERNEL_OK")
</pallas_src>

<mosaic_0001>
module attributes {stable_mosaic.version = 11 : i64} {
  func.func @laplace_fwd_kernel(%arg0: i32, %arg1: i32, %arg2: memref<2x1024xf32, #tpu.memory_space<vmem>>, %arg3: memref<1024x32xbf16, #tpu.memory_space<vmem>>, %arg4: memref<1x32xf32, #tpu.memory_space<vmem>>, %arg5: memref<1x32xf32, #tpu.memory_space<vmem>>, %arg6: memref<1x32xf32, #tpu.memory_space<vmem>>, %arg7: memref<32x128xf32, #tpu.memory_space<vmem>>, %arg8: memref<1x128xf32, #tpu.memory_space<vmem>>, %arg9: memref<128x8xf32, #tpu.memory_space<vmem>>, %arg10: memref<1x8xf32, #tpu.memory_space<vmem>>, %arg11: memref<2x8xf32, #tpu.memory_space<vmem>>, %arg12: memref<2x128xf32, #tpu.memory_space<vmem>>, %arg13: memref<2x32xf32, #tpu.memory_space<vmem>>) attributes {dimension_semantics = [#tpu.dimension_semantics<parallel>, #tpu.dimension_semantics<arbitrary>], iteration_bounds = array<i64: 1, 1>, scalar_prefetch = 0 : i64, scratch_operands = 1 : i64, tpu.core_type = #tpu.core_type<tc>, window_params = [{transform_indices = @transform_0, window_bounds = array<i64: 2, 1024>}, {pipeline_mode = #tpu.pipeline_mode<synchronous>, transform_indices = @transform_1, window_bounds = array<i64: 1024, 32>}, {pipeline_mode = #tpu.pipeline_mode<synchronous>, transform_indices = @transform_2, window_bounds = array<i64: 1, 32>}, {pipeline_mode = #tpu.pipeline_mode<synchronous>, transform_indices = @transform_3, window_bounds = array<i64: 1, 32>}, {pipeline_mode = #tpu.pipeline_mode<synchronous>, transform_indices = @transform_4, window_bounds = array<i64: 1, 32>}, {pipeline_mode = #tpu.pipeline_mode<synchronous>, transform_indices = @transform_5, window_bounds = array<i64: 32, 128>}, {pipeline_mode = #tpu.pipeline_mode<synchronous>, transform_indices = @transform_6, window_bounds = array<i64: 1, 128>}, {pipeline_mode = #tpu.pipeline_mode<synchronous>, transform_indices = @transform_7, window_bounds = array<i64: 128, 8>}, {pipeline_mode = #tpu.pipeline_mode<synchronous>, transform_indices = @transform_8, window_bounds = array<i64: 1, 8>}, {transform_indices = @transform_9, window_bounds = array<i64: 2, 8>}, {transform_indices = @transform_10, window_bounds = array<i64: 2, 128>}]} {
    %c0_i32 = arith.constant 0 : i32
    %0 = arith.cmpi eq, %arg1, %c0_i32 : i32
    %1 = arith.extui %0 : i1 to i32
    %c0_i32_0 = arith.constant 0 : i32
    %2 = arith.cmpi ne, %1, %c0_i32_0 : i32
    scf.if %2 {
      %cst_9 = arith.constant 0.000000e+00 : f32
      %16 = vector.broadcast %cst_9 : f32 to vector<2x32xf32>
      %c0_10 = arith.constant 0 : index
      %c0_11 = arith.constant 0 : index
      %17 = vector.load %arg13[%c0_10, %c0_11] : memref<2x32xf32, #tpu.memory_space<vmem>>, vector<2x32xf32>
      tpu.vector_store %arg13[%c0_10, %c0_11], %16 {strides = array<i32>} : memref<2x32xf32, #tpu.memory_space<vmem>>, vector<2x32xf32>,
    } else {
    }
    %c0 = arith.constant 0 : index
    %c0_1 = arith.constant 0 : index
    %3 = vector.load %arg2[%c0, %c0_1] : memref<2x1024xf32, #tpu.memory_space<vmem>>, vector<2x1024xf32>
    %4 = arith.truncf %3 : vector<2x1024xf32> to vector<2x1024xbf16>
    %c1024_i32 = arith.constant 1024 : i32
    %5 = arith.muli %arg1, %c1024_i32 : i32
    %6 = tpu.assume_multiple %5, 1024 : i32
    %7 = arith.index_cast %6 : i32 to index
    %c0_2 = arith.constant 0 : index
    %8 = vector.load %arg3[%7, %c0_2] : memref<1024x32xbf16, #tpu.memory_space<vmem>>, vector<1024x32xbf16>
    %c0_3 = arith.constant 0 : index
    %c0_4 = arith.constant 0 : index
    %9 = vector.load %arg13[%c0_3, %c0_4] : memref<2x32xf32, #tpu.memory_space<vmem>>, vector<2x32xf32>
    %cst = arith.constant dense<0.000000e+00> : vector<2x32xf32>
    %10 = tpu.matmul %4, %8, %cst {dimension_numbers = #tpu.dot_dimension_numbers<[1], [0], [0], [1], [0, 0, 1, 1], [], []>} : vector<2x1024xbf16>, vector<1024x32xbf16>, vector<2x32xf32> -> vector<2x32xf32>
    %11 = arith.addf %9, %10 : vector<2x32xf32>
    %c0_5 = arith.constant 0 : index
    %c0_6 = arith.constant 0 : index
    %12 = vector.load %arg13[%c0_5, %c0_6] : memref<2x32xf32, #tpu.memory_space<vmem>>, vector<2x32xf32>
    tpu.vector_store %arg13[%c0_5, %c0_6], %11 {strides = array<i32>} : memref<2x32xf32, #tpu.memory_space<vmem>>, vector<2x32xf32>,
    %c0_i32_7 = arith.constant 0 : i32
    %13 = arith.cmpi eq, %arg1, %c0_i32_7 : i32
    %14 = arith.extui %13 : i1 to i32
    %c0_i32_8 = arith.constant 0 : i32
    %15 = arith.cmpi ne, %14, %c0_i32_8 : i32
    scf.if %15 {
      %c0_9 = arith.constant 0 : index
      %c0_10 = arith.constant 0 : index
      %16 = vector.load %arg13[%c0_9, %c0_10] : memref<2x32xf32, #tpu.memory_space<vmem>>, vector<2x32xf32>
      %c0_11 = arith.constant 0 : index
      %c0_12 = arith.constant 0 : index
      %17 = vector.load %arg4[%c0_11, %c0_12] : memref<1x32xf32, #tpu.memory_space<vmem>>, vector<1x32xf32>
      %18 = vector.broadcast %17 : vector<1x32xf32> to vector<2x32xf32>
      %19 = arith.addf %16, %18 : vector<2x32xf32>
      %cst_13 = arith.constant dense<0.000000e+00> : vector<2xf32>
      %20 = vector.multi_reduction <add>, %19, %cst_13 [1] : vector<2x32xf32> to vector<2xf32>
      %21 = vector.shape_cast %20 : vector<2xf32> to vector<2x1xf32>
      %cst_14 = arith.constant 3.200000e+01 : f32
      %22 = vector.broadcast %cst_14 : f32 to vector<2x1xf32>
      %23 = arith.divf %21, %22 : vector<2x1xf32>
      %24 = vector.broadcast %23 : vector<2x1xf32> to vector<2x32xf32>
      %25 = arith.subf %19, %24 : vector<2x32xf32>
      %26 = vector.broadcast %23 : vector<2x1xf32> to vector<2x32xf32>
      %27 = arith.subf %19, %26 : vector<2x32xf32>
      %28 = arith.mulf %25, %27 : vector<2x32xf32>
      %cst_15 = arith.constant dense<0.000000e+00> : vector<2xf32>
      %29 = vector.multi_reduction <add>, %28, %cst_15 [1] : vector<2x32xf32> to vector<2xf32>
      %30 = vector.shape_cast %29 : vector<2xf32> to vector<2x1xf32>
      %cst_16 = arith.constant 3.200000e+01 : f32
      %31 = vector.broadcast %cst_16 : f32 to vector<2x1xf32>
      %32 = arith.divf %30, %31 : vector<2x1xf32>
      %33 = vector.broadcast %23 : vector<2x1xf32> to vector<2x32xf32>
      %34 = arith.subf %19, %33 : vector<2x32xf32>
      %cst_17 = arith.constant 9.99999996E-13 : f32
      %35 = vector.broadcast %cst_17 : f32 to vector<2x1xf32>
      %36 = arith.addf %32, %35 : vector<2x1xf32>
      %37 = math.rsqrt %36 : vector<2x1xf32>
      %38 = vector.broadcast %37 : vector<2x1xf32> to vector<2x32xf32>
      %39 = arith.mulf %34, %38 : vector<2x32xf32>
      %c0_18 = arith.constant 0 : index
      %c0_19 = arith.constant 0 : index
      %40 = vector.load %arg5[%c0_18, %c0_19] : memref<1x32xf32, #tpu.memory_space<vmem>>, vector<1x32xf32>
      %41 = vector.broadcast %40 : vector<1x32xf32> to vector<2x32xf32>
      %42 = arith.mulf %39, %41 : vector<2x32xf32>
      %c0_20 = arith.constant 0 : index
      %c0_21 = arith.constant 0 : index
      %43 = vector.load %arg6[%c0_20, %c0_21] : memref<1x32xf32, #tpu.memory_space<vmem>>, vector<1x32xf32>
      %44 = vector.broadcast %43 : vector<1x32xf32> to vector<2x32xf32>
      %45 = arith.addf %42, %44 : vector<2x32xf32>
      %c0_22 = arith.constant 0 : index
      %c0_23 = arith.constant 0 : index
      %46 = vector.load %arg7[%c0_22, %c0_23] : memref<32x128xf32, #tpu.memory_space<vmem>>, vector<32x128xf32>
      %cst_24 = arith.constant dense<0.000000e+00> : vector<2x128xf32>
      %47 = tpu.matmul %45, %46, %cst_24 {dimension_numbers = #tpu.dot_dimension_numbers<[1], [0], [0], [1], [0, 0, 1, 1], [], []>} : vector<2x32xf32>, vector<32x128xf32>, vector<2x128xf32> -> vector<2x128xf32>
      %c0_25 = arith.constant 0 : index
      %c0_26 = arith.constant 0 : index
      %48 = vector.load %arg8[%c0_25, %c0_26] : memref<1x128xf32, #tpu.memory_space<vmem>>, vector<1x128xf32>
      %49 = vector.broadcast %48 : vector<1x128xf32> to vector<2x128xf32>
      %50 = arith.addf %47, %49 : vector<2x128xf32>
      %51 = math.cos %50 : vector<2x128xf32>
      %c0_27 = arith.constant 0 : index
      %c0_28 = arith.constant 0 : index
      %52 = vector.load %arg12[%c0_27, %c0_28] : memref<2x128xf32, #tpu.memory_space<vmem>>, vector<2x128xf32>
      tpu.vector_store %arg12[%c0_27, %c0_28], %51 {strides = array<i32>} : memref<2x128xf32, #tpu.memory_space<vmem>>, vector<2x128xf32>,
      %c0_29 = arith.constant 0 : index
      %c0_30 = arith.constant 0 : index
      %53 = vector.load %arg9[%c0_29, %c0_30] : memref<128x8xf32, #tpu.memory_space<vmem>>, vector<128x8xf32>
      %cst_31 = arith.constant dense<0.000000e+00> : vector<2x8xf32>
      %54 = tpu.matmul %51, %53, %cst_31 {dimension_numbers = #tpu.dot_dimension_numbers<[1], [0], [0], [1], [0, 0, 1, 1], [], []>} : vector<2x128xf32>, vector<128x8xf32>, vector<2x8xf32> -> vector<2x8xf32>
      %c0_32 = arith.constant 0 : index
      %c0_33 = arith.constant 0 : index
      %55 = vector.load %arg10[%c0_32, %c0_33] : memref<1x8xf32, #tpu.memory_space<vmem>>, vector<1x8xf32>
      %56 = vector.broadcast %55 : vector<1x8xf32> to vector<2x8xf32>
      %57 = arith.addf %54, %56 : vector<2x8xf32>
      %c0_34 = arith.constant 0 : index
      %c0_35 = arith.constant 0 : index
      %58 = vector.load %arg11[%c0_34, %c0_35] : memref<2x8xf32, #tpu.memory_space<vmem>>, vector<2x8xf32>
      tpu.vector_store %arg11[%c0_34, %c0_35], %57 {strides = array<i32>} : memref<2x8xf32, #tpu.memory_space<vmem>>, vector<2x8xf32>,
    } else {
    }
    return
  }
  func.func @transform_0(%arg0: i32, %arg1: i32) -> (i32, i32) {
    %c0_i32 = arith.constant 0 : i32
    return %arg0, %arg1 : i32, i32
  }
  func.func @transform_1(%arg0: i32, %arg1: i32) -> (i32, i32) {
    %c0_i32 = arith.constant 0 : i32
    %c0_i32_0 = arith.constant 0 : i32
    %c0_i32_1 = arith.constant 0 : i32
    return %c0_i32, %c0_i32_0 : i32, i32
  }
  func.func @transform_2(%arg0: i32, %arg1: i32) -> (i32, i32) {
    %c0_i32 = arith.constant 0 : i32
    %c0_i32_0 = arith.constant 0 : i32
    %c0_i32_1 = arith.constant 0 : i32
    return %c0_i32, %c0_i32_0 : i32, i32
  }
  func.func @transform_3(%arg0: i32, %arg1: i32) -> (i32, i32) {
    %c0_i32 = arith.constant 0 : i32
    %c0_i32_0 = arith.constant 0 : i32
    %c0_i32_1 = arith.constant 0 : i32
    return %c0_i32, %c0_i32_0 : i32, i32
  }
  func.func @transform_4(%arg0: i32, %arg1: i32) -> (i32, i32) {
    %c0_i32 = arith.constant 0 : i32
    %c0_i32_0 = arith.constant 0 : i32
    %c0_i32_1 = arith.constant 0 : i32
    return %c0_i32, %c0_i32_0 : i32, i32
  }
  func.func @transform_5(%arg0: i32, %arg1: i32) -> (i32, i32) {
    %c0_i32 = arith.constant 0 : i32
    %c0_i32_0 = arith.constant 0 : i32
    %c0_i32_1 = arith.constant 0 : i32
    return %c0_i32, %c0_i32_0 : i32, i32
  }
  func.func @transform_6(%arg0: i32, %arg1: i32) -> (i32, i32) {
    %c0_i32 = arith.constant 0 : i32
    %c0_i32_0 = arith.constant 0 : i32
    %c0_i32_1 = arith.constant 0 : i32
    return %c0_i32, %c0_i32_0 : i32, i32
  }
  func.func @transform_7(%arg0: i32, %arg1: i32) -> (i32, i32) {
    %c0_i32 = arith.constant 0 : i32
    %c0_i32_0 = arith.constant 0 : i32
    %c0_i32_1 = arith.constant 0 : i32
    return %c0_i32, %c0_i32_0 : i32, i32
  }
  func.func @transform_8(%arg0: i32, %arg1: i32) -> (i32, i32) {
    %c0_i32 = arith.constant 0 : i32
    %c0_i32_0 = arith.constant 0 : i32
    %c0_i32_1 = arith.constant 0 : i32
    return %c0_i32, %c0_i32_0 : i32, i32
  }
  func.func @transform_9(%arg0: i32, %arg1: i32) -> (i32, i32) {
    %c0_i32 = arith.constant 0 : i32
    %c0_i32_0 = arith.constant 0 : i32
    return %arg0, %c0_i32 : i32, i32
  }
  func.func @transform_10(%arg0: i32, %arg1: i32) -> (i32, i32) {
    %c0_i32 = arith.constant 0 : i32
    %c0_i32_0 = arith.constant 0 : i32
    return %arg0, %c0_i32 : i32, i32
  }
}

</mosaic_0001>

<llo_original>
// kernel: tpu_custom_call.1
$region0: #{tpu_custom_call.1}
  #allocation0 [shape = 'u32[]', space=smem, size = 0x4, offset = 0x4, fixed_abs, tag = 'smem constant byte address 0x4 - core index']
  #allocation1 [shape = 'u32[72,128]{1,0:T(1,128)}', space=vmem, size = 0x9000, scoped, tag = 'internal scratch']
  #allocation2 [shape = 'f32[2,32]{1,0:T(2,128)}', space=vmem, size = 0x400, scoped, tag = 'scratch operand']
  %s0 = inlined_call_operand.vmem [shape: f32[2,1024], index: 0, kind: input, shape index: {}]
  %s1 = inlined_call_operand.vmem [shape: bf16[1024,32], index: 1, kind: input, shape index: {}]
  %s2 = inlined_call_operand.vmem [shape: f32[1,32], index: 2, kind: input, shape index: {}]
  %s3 = inlined_call_operand.vmem [shape: f32[1,32], index: 3, kind: input, shape index: {}]
  %s4 = inlined_call_operand.vmem [shape: f32[1,32], index: 4, kind: input, shape index: {}]
  %s5 = inlined_call_operand.vmem [shape: f32[32,128], index: 5, kind: input, shape index: {}]
  %s6 = inlined_call_operand.vmem [shape: f32[1,128], index: 6, kind: input, shape index: {}]
  %s7 = inlined_call_operand.vmem [shape: f32[128,8], index: 7, kind: input, shape index: {}]
  %s8 = inlined_call_operand.vmem [shape: f32[1,8], index: 8, kind: input, shape index: {}]
  %s9 = inlined_call_operand.hbm [shape: f32[2,8], index: 9, kind: output, shape index: {0}]
  %s10 = inlined_call_operand.hbm [shape: f32[2,128], index: 10, kind: output, shape index: {1}]
  %11 = xla_tuple %s9, %s10
  %s12 = sld [smem:[#allocation0]]
  $region62: #{tpu_custom_call.1} parent=0
    _
  %s14 = ssub.s32 1, %s12
  %s15 = scalar_select 0, %s14, %s12
  $region1: #{tpu_custom_call.1} parent=0
    #allocation3 [shape = 'u8[1024]{0}', space=vmem, size = 0x400, scoped, tag = 'output window, operand 0, single buffered']
    #allocation4 [shape = 's32[1]{0}', space=sflag, size = 0x4, scoped, tag = 'scoped memory for tpu_custom_call.1']
    #allocation5 [shape = 'u8[1024]{0}', space=vmem, size = 0x400, scoped, tag = 'output window, operand 1, single buffered']
    #allocation6 [shape = 's32[1]{0}', space=sflag, size = 0x4, scoped, tag = 'scoped memory for tpu_custom_call.1']
    %16 = vsyncpa [#allocation4], 0
    %17 = vsyncpa [#allocation6], 0
    // Predicated region
    $region2: #{tpu_custom_call.1} parent=1 // pred_check
      _
    $region3: #{tpu_custom_call.1} parent=1 // pred_check_branch
      %19 = sbr.rel (0) target = $region5
    $region4: #{tpu_custom_call.1} parent=1 // pred_region
      _
    $region5: #{tpu_custom_call.1} parent=1 // pred_fallthru
      _
    // Predicated region
    $region6: #{tpu_custom_call.1} parent=1 // pred_check
      _
    $region7: #{tpu_custom_call.1} parent=1 // pred_check_branch
      %21 = sbr.rel (0) target = $region9
    $region8: #{tpu_custom_call.1} parent=1 // pred_region
      _
    $region9: #{tpu_custom_call.1} parent=1 // pred_fallthru
      _
    // Predicated region
    $region10: #{tpu_custom_call.1} parent=1 // pred_check
      _
    $region11: #{tpu_custom_call.1} parent=1 // pred_check_branch
      %23 = sbr.rel (0) target = $region13
    $region12: #{tpu_custom_call.1} parent=1 // pred_region
      _
    $region13: #{tpu_custom_call.1} parent=1 // pred_fallthru
      _
    // Predicated region
    $region14: #{tpu_custom_call.1} parent=1 // pred_check
      _
    $region15: #{tpu_custom_call.1} parent=1 // pred_check_branch
      %25 = sbr.rel (0) target = $region17
    $region16: #{tpu_custom_call.1} parent=1 // pred_region
      _
    $region17: #{tpu_custom_call.1} parent=1 // pred_fallthru
      _
    // Predicated region
    $region18: #{tpu_custom_call.1} parent=1 // pred_check
      _
    $region19: #{tpu_custom_call.1} parent=1 // pred_check_branch
      %27 = sbr.rel (0) target = $region21
    $region20: #{tpu_custom_call.1} parent=1 // pred_region
      _
    $region21: #{tpu_custom_call.1} parent=1 // pred_fallthru
      _
    // Predicated region
    $region22: #{tpu_custom_call.1} parent=1 // pred_check
      _
    $region23: #{tpu_custom_call.1} parent=1 // pred_check_branch
      %29 = sbr.rel (0) target = $region25
    $region24: #{tpu_custom_call.1} parent=1 // pred_region
      _
    $region25: #{tpu_custom_call.1} parent=1 // pred_fallthru
      _
    // Predicated region
    $region26: #{tpu_custom_call.1} parent=1 // pred_check
      _
    $region27: #{tpu_custom_call.1} parent=1 // pred_check_branch
      %31 = sbr.rel (0) target = $region29
    $region28: #{tpu_custom_call.1} parent=1 // pred_region
      _
    $region29: #{tpu_custom_call.1} parent=1 // pred_fallthru
      _
    // Predicated region
    $region30: #{tpu_custom_call.1} parent=1 // pred_check
      _
    $region31: #{tpu_custom_call.1} parent=1 // pred_check_branch
      %33 = sbr.rel (0) target = $region33
    $region32: #{tpu_custom_call.1} parent=1 // pred_region
      _
    $region33: #{tpu_custom_call.1} parent=1 // pred_fallthru
      _
    // Predicated region
    $region34: #{tpu_custom_call.1} parent=1 // pred_check
      _
    $region35: #{tpu_custom_call.1} parent=1 // pred_check_branch
      %35 = sbr.rel (0) target = $region37
    $region36: #{tpu_custom_call.1} parent=1 // pred_region
      _
    $region37: #{tpu_custom_call.1} parent=1 // pred_fallthru
      _
    %p36 = scmp.eq.s32.totalorder 0, 0
    // Predicated region
    $region38: #{tpu_custom_call.1} parent=1 // pred_check
      %p37 = pneg %p36
    $region39: #{tpu_custom_call.1} parent=1 // pred_check_branch
      %39 = sbr.rel (%p37) target = $region41
    $region40: #{tpu_custom_call.1} parent=1 // pred_region
      %vm40 = vcmask 254976
      %41 = vst.msk [vmem:[#allocation2] sm:$0x3] %vm40, 0.0
    $region41: #{tpu_custom_call.1} parent=1 // pred_fallthru
      _
    %v42 = vld [vmem:[%s0] sm:$0xff]
    %v43 = vld [vmem:[%s0 + $0x8] sm:$0xff]
    %46 = vst [vmem:[#allocation1] ss:$4 sm:$0xff] %v42
    %s47 = scalar_lea.vmem [#allocation1], 32
    %48 = vst [vmem:[%s47] ss:$4 sm:$0xff] %v43
    %v49 = vld.sshfl [vmem:[#allocation1] sm:$0xff pattern:$0x73625140]
    %v50 = vld.sshfl [vmem:[#allocation1 + $0x8] sm:$0xff pattern:$0x73625140]
    %v51 = vld.sshfl [vmem:[#allocation1 + $0x10] sm:$0xff pattern:$0x73625140]
    %v52 = vld.sshfl [vmem:[#allocation1 + $0x18] sm:$0xff pattern:$0x73625140]
    %v53 = vld.sshfl [vmem:[#allocation1 + $0x20] sm:$0xff pattern:$0x73625140]
    %v54 = vld.sshfl [vmem:[#allocation1 + $0x28] sm:$0xff pattern:$0x73625140]
    %v55 = vld.sshfl [vmem:[#allocation1 + $0x30] sm:$0xff pattern:$0x73625140]
    %v56 = vld.sshfl [vmem:[#allocation1 + $0x38] sm:$0xff pattern:$0x73625140]
    %v65 = vpack.c.bf16 %v49, %v49
    %v66 = vpack.c.bf16 %v50, %v50
    %v67 = vpack.c.bf16 %v51, %v51
    %v68 = vpack.c.bf16 %v52, %v52
    %v69 = vpack.c.bf16 %v53, %v53
    %v70 = vpack.c.bf16 %v54, %v54
    %v71 = vpack.c.bf16 %v55, %v55
    %v72 = vpack.c.bf16 %v56, %v56
    %s73 = smul.u32 0, 1024
    %s74 = sshra.s32 %s73, 3
    %s75 = sand.u32 %s73, 7
    %s76 = smul.addr %s74, 4
    %s77 = scalar_lea.vmem %s1, %s76
    %v78 = vld [vmem:[%s77] sm:$0xf]
    %v79 = vld [vmem:[%s77 + $0x4] sm:$0xf]
    %v80 = vld [vmem:[%s77 + $0x8] sm:$0xf]
    %v81 = vld [vmem:[%s77 + $0xc] sm:$0xf]
    %v82 = vld [vmem:[%s77 + $0x10] sm:$0xf]
    %v83 = vld [vmem:[%s77 + $0x14] sm:$0xf]
    %v84 = vld [vmem:[%s77 + $0x18] sm:$0xf]
    %v85 = vld [vmem:[%s77 + $0x1c] sm:$0xf]
    %v86 = vld [vmem:[%s77 + $0x20] sm:$0xf]
    %v87 = vld [vmem:[%s77 + $0x24] sm:$0xf]
    %v88 = vld [vmem:[%s77 + $0x28] sm:$0xf]
    %v89 = vld [vmem:[%s77 + $0x2c] sm:$0xf]
    %v90 = vld [vmem:[%s77 + $0x30] sm:$0xf]
    %v91 = vld [vmem:[%s77 + $0x34] sm:$0xf]
    %v92 = vld [vmem:[%s77 + $0x38] sm:$0xf]
    %v93 = vld [vmem:[%s77 + $0x3c] sm:$0xf]
    %v94 = vld [vmem:[%s77 + $0x40] sm:$0xf]
    %v95 = vld [vmem:[%s77 + $0x44] sm:$0xf]
    %v96 = vld [vmem:[%s77 + $0x48] sm:$0xf]
    %v97 = vld [vmem:[%s77 + $0x4c] sm:$0xf]
    %v98 = vld [vmem:[%s77 + $0x50] sm:$0xf]
    %v99 = vld [vmem:[%s77 + $0x54] sm:$0xf]
    %v100 = vld [vmem:[%s77 + $0x58] sm:$0xf]
    %v101 = vld [vmem:[%s77 + $0x5c] sm:$0xf]
    %v102 = vld [vmem:[%s77 + $0x60] sm:$0xf]
    %v103 = vld [vmem:[%s77 + $0x64] sm:$0xf]
    %v104 = vld [vmem:[%s77 + $0x68] sm:$0xf]
    %v105 = vld [vmem:[%s77 + $0x6c] sm:$0xf]
    %v106 = vld [vmem:[%s77 + $0x70] sm:$0xf]
    %v107 = vld [vmem:[%s77 + $0x74] sm:$0xf]
    %v108 = vld [vmem:[%s77 + $0x78] sm:$0xf]
    %v109 = vld [vmem:[%s77 + $0x7c] sm:$0xf]
    %v110 = vld [vmem:[%s77 + $0x80] sm:$0xf]
    %v111 = vld [vmem:[%s77 + $0x84] sm:$0xf]
    %v112 = vld [vmem:[%s77 + $0x88] sm:$0xf]
    %v113 = vld [vmem:[%s77 + $0x8c] sm:$0xf]
    %v114 = vld [vmem:[%s77 + $0x90] sm:$0xf]
    %v115 = vld [vmem:[%s77 + $0x94] sm:$0xf]
    %v116 = vld [vmem:[%s77 + $0x98] sm:$0xf]
    %v117 = vld [vmem:[%s77 + $0x9c] sm:$0xf]
    %v118 = vld [vmem:[%s77 + $0xa0] sm:$0xf]
    %v119 = vld [vmem:[%s77 + $0xa4] sm:$0xf]
    %v120 = vld [vmem:[%s77 + $0xa8] sm:$0xf]
    %v121 = vld [vmem:[%s77 + $0xac] sm:$0xf]
    %v122 = vld [vmem:[%s77 + $0xb0] sm:$0xf]
    %v123 = vld [vmem:[%s77 + $0xb4] sm:$0xf]
    %v124 = vld [vmem:[%s77 + $0xb8] sm:$0xf]
    %v125 = vld [vmem:[%s77 + $0xbc] sm:$0xf]
    %v126 = vld [vmem:[%s77 + $0xc0] sm:$0xf]
    %v127 = vld [vmem:[%s77 + $0xc4] sm:$0xf]
    %v128 = vld [vmem:[%s77 + $0xc8] sm:$0xf]
    %v129 = vld [vmem:[%s77 + $0xcc] sm:$0xf]
    %v130 = vld [vmem:[%s77 + $0xd0] sm:$0xf]
    %v131 = vld [vmem:[%s77 + $0xd4] sm:$0xf]
    %v132 = vld [vmem:[%s77 + $0xd8] sm:$0xf]
    %v133 = vld [vmem:[%s77 + $0xdc] sm:$0xf]
    %v134 = vld [vmem:[%s77 + $0xe0] sm:$0xf]
    %v135 = vld [vmem:[%s77 + $0xe4] sm:$0xf]
    %v136 = vld [vmem:[%s77 + $0xe8] sm:$0xf]
    %v137 = vld [vmem:[%s77 + $0xec] sm:$0xf]
    %v138 = vld [vmem:[%s77 + $0xf0] sm:$0xf]
    %v139 = vld [vmem:[%s77 + $0xf4] sm:$0xf]
    %v140 = vld [vmem:[%s77 + $0xf8] sm:$0xf]
    %v141 = vld [vmem:[%s77 + $0xfc] sm:$0xf]
    %v142 = vld [vmem:[%s77 + $0x100] sm:$0xf]
    %v143 = vld [vmem:[%s77 + $0x104] sm:$0xf]
    %v144 = vld [vmem:[%s77 + $0x108] sm:$0xf]
    %v145 = vld [vmem:[%s77 + $0x10c] sm:$0xf]
    %v146 = vld [vmem:[%s77 + $0x110] sm:$0xf]
    %v147 = vld [vmem:[%s77 + $0x114] sm:$0xf]
    %v148 = vld [vmem:[%s77 + $0x118] sm:$0xf]
    %v149 = vld [vmem:[%s77 + $0x11c] sm:$0xf]
    %v150 = vld [vmem:[%s77 + $0x120] sm:$0xf]
    %v151 = vld [vmem:[%s77 + $0x124] sm:$0xf]
    %v152 = vld [vmem:[%s77 + $0x128] sm:$0xf]
    %v153 = vld [vmem:[%s77 + $0x12c] sm:$0xf]
    %v154 = vld [vmem:[%s77 + $0x130] sm:$0xf]
    %v155 = vld [vmem:[%s77 + $0x134] sm:$0xf]
    %v156 = vld [vmem:[%s77 + $0x138] sm:$0xf]
    %v157 = vld [vmem:[%s77 + $0x13c] sm:$0xf]
    %v158 = vld [vmem:[%s77 + $0x140] sm:$0xf]
    %v159 = vld [vmem:[%s77 + $0x144] sm:$0xf]
    %v160 = vld [vmem:[%s77 + $0x148] sm:$0xf]
    %v161 = vld [vmem:[%s77 + $0x14c] sm:$0xf]
    %v162 = vld [vmem:[%s77 + $0x150] sm:$0xf]
    %v163 = vld [vmem:[%s77 + $0x154] sm:$0xf]
    %v164 = vld [vmem:[%s77 + $0x158] sm:$0xf]
    %v165 = vld [vmem:[%s77 + $0x15c] sm:$0xf]
    %v166 = vld [vmem:[%s77 + $0x160] sm:$0xf]
    %v167 = vld [vmem:[%s77 + $0x164] sm:$0xf]
    %v168 = vld [vmem:[%s77 + $0x168] sm:$0xf]
    %v169 = vld [vmem:[%s77 + $0x16c] sm:$0xf]
    %v170 = vld [vmem:[%s77 + $0x170] sm:$0xf]
    %v171 = vld [vmem:[%s77 + $0x174] sm:$0xf]
    %v172 = vld [vmem:[%s77 + $0x178] sm:$0xf]
    %v173 = vld [vmem:[%s77 + $0x17c] sm:$0xf]
    %v174 = vld [vmem:[%s77 + $0x180] sm:$0xf]
    %v175 = vld [vmem:[%s77 + $0x184] sm:$0xf]
    %v176 = vld [vmem:[%s77 + $0x188] sm:$0xf]
    %v177 = vld [vmem:[%s77 + $0x18c] sm:$0xf]
    %v178 = vld [vmem:[%s77 + $0x190] sm:$0xf]
    %v179 = vld [vmem:[%s77 + $0x194] sm:$0xf]
    %v180 = vld [vmem:[%s77 + $0x198] sm:$0xf]
    %v181 = vld [vmem:[%s77 + $0x19c] sm:$0xf]
    %v182 = vld [vmem:[%s77 + $0x1a0] sm:$0xf]
    %v183 = vld [vmem:[%s77 + $0x1a4] sm:$0xf]
    %v184 = vld [vmem:[%s77 + $0x1a8] sm:$0xf]
    %v185 = vld [vmem:[%s77 + $0x1ac] sm:$0xf]
    %v186 = vld [vmem:[%s77 + $0x1b0] sm:$0xf]
    %v187 = vld [vmem:[%s77 + $0x1b4] sm:$0xf]
    %v188 = vld [vmem:[%s77 + $0x1b8] sm:$0xf]
    %v189 = vld [vmem:[%s77 + $0x1bc] sm:$0xf]
    %v190 = vld [vmem:[%s77 + $0x1c0] sm:$0xf]
    %v191 = vld [vmem:[%s77 + $0x1c4] sm:$0xf]
    %v192 = vld [vmem:[%s77 + $0x1c8] sm:$0xf]
    %v193 = vld [vmem:[%s77 + $0x1cc] sm:$0xf]
    %v194 = vld [vmem:[%s77 + $0x1d0] sm:$0xf]
    %v195 = vld [vmem:[%s77 + $0x1d4] sm:$0xf]
    %v196 = vld [vmem:[%s77 + $0x1d8] sm:$0xf]
    %v197 = vld [vmem:[%s77 + $0x1dc] sm:$0xf]
    %v198 = vld [vmem:[%s77 + $0x1e0] sm:$0xf]
    %v199 = vld [vmem:[%s77 + $0x1e4] sm:$0xf]
    %v200 = vld [vmem:[%s77 + $0x1e8] sm:$0xf]
    %v201 = vld [vmem:[%s77 + $0x1ec] sm:$0xf]
    %v202 = vld [vmem:[%s77 + $0x1f0] sm:$0xf]
    %v203 = vld [vmem:[%s77 + $0x1f4] sm:$0xf]
    %v204 = vld [vmem:[%s77 + $0x1f8] sm:$0xf]
    %v205 = vld [vmem:[%s77 + $0x1fc] sm:$0xf]
    %v206 = vld [vmem:[#allocation2] sm:$0x3]
    %v335 = vunpack.c.l.b16 %v78
    %v336 = vunpack.c.l.b16 %v79
    %v337 = vunpack.c.l.b16 %v80
    %v338 = vunpack.c.l.b16 %v81
    %v339 = vunpack.c.l.b16 %v82
    %v340 = vunpack.c.l.b16 %v83
    %v341 = vunpack.c.l.b16 %v84
    %v342 = vunpack.c.l.b16 %v85
    %v343 = vunpack.c.l.b16 %v86
    %v344 = vunpack.c.l.b16 %v87
    %v345 = vunpack.c.l.b16 %v88
    %v346 = vunpack.c.l.b16 %v89
    %v347 = vunpack.c.l.b16 %v90
    %v348 = vunpack.c.l.b16 %v91
    %v349 = vunpack.c.l.b16 %v92
    %v350 = vunpack.c.l.b16 %v93
    %v351 = vunpack.c.l.b16 %v94
    %v352 = vunpack.c.l.b16 %v95
    %v353 = vunpack.c.l.b16 %v96
    %v354 = vunpack.c.l.b16 %v97
    %v355 = vunpack.c.l.b16 %v98
    %v356 = vunpack.c.l.b16 %v99
    %v357 = vunpack.c.l.b16 %v100
    %v358 = vunpack.c.l.b16 %v101
    %v359 = vunpack.c.l.b16 %v102
    %v360 = vunpack.c.l.b16 %v103
    %v361 = vunpack.c.l.b16 %v104
    %v362 = vunpack.c.l.b16 %v105
    %v363 = vunpack.c.l.b16 %v106
    %v364 = vunpack.c.l.b16 %v107
    %v365 = vunpack.c.l.b16 %v108
    %v366 = vunpack.c.l.b16 %v109
    %v367 = vunpack.c.l.b16 %v110
    %v368 = vunpack.c.l.b16 %v111
    %v369 = vunpack.c.l.b16 %v112
    %v370 = vunpack.c.l.b16 %v113
    %v371 = vunpack.c.l.b16 %v114
    %v372 = vunpack.c.l.b16 %v115
    %v373 = vunpack.c.l.b16 %v116
    %v374 = vunpack.c.l.b16 %v117
    %v375 = vunpack.c.l.b16 %v118
    %v376 = vunpack.c.l.b16 %v119
    %v377 = vunpack.c.l.b16 %v120
    %v378 = vunpack.c.l.b16 %v121
    %v379 = vunpack.c.l.b16 %v122
    %v380 = vunpack.c.l.b16 %v123
    %v381 = vunpack.c.l.b16 %v124
    %v382 = vunpack.c.l.b16 %v125
    %v383 = vunpack.c.l.b16 %v126
    %v384 = vunpack.c.l.b16 %v127
    %v385 = vunpack.c.l.b16 %v128
    %v386 = vunpack.c.l.b16 %v129
    %v387 = vunpack.c.l.b16 %v130
    %v388 = vunpack.c.l.b16 %v131
    %v389 = vunpack.c.l.b16 %v132
    %v390 = vunpack.c.l.b16 %v133
    %v391 = vunpack.c.l.b16 %v134
    %v392 = vunpack.c.l.b16 %v135
    %v393 = vunpack.c.l.b16 %v136
    %v394 = vunpack.c.l.b16 %v137
    %v395 = vunpack.c.l.b16 %v138
    %v396 = vunpack.c.l.b16 %v139
    %v397 = vunpack.c.l.b16 %v140
    %v398 = vunpack.c.l.b16 %v141
    %v399 = vunpack.c.l.b16 %v142
    %v400 = vunpack.c.l.b16 %v143
    %v401 = vunpack.c.l.b16 %v144
    %v402 = vunpack.c.l.b16 %v145
    %v403 = vunpack.c.l.b16 %v146
    %v404 = vunpack.c.l.b16 %v147
    %v405 = vunpack.c.l.b16 %v148
    %v406 = vunpack.c.l.b16 %v149
    %v407 = vunpack.c.l.b16 %v150
    %v408 = vunpack.c.l.b16 %v151
    %v409 = vunpack.c.l.b16 %v152
    %v410 = vunpack.c.l.b16 %v153
    %v411 = vunpack.c.l.b16 %v154
    %v412 = vunpack.c.l.b16 %v155
    %v413 = vunpack.c.l.b16 %v156
    %v414 = vunpack.c.l.b16 %v157
    %v415 = vunpack.c.l.b16 %v158
    %v416 = vunpack.c.l.b16 %v159
    %v417 = vunpack.c.l.b16 %v160
    %v418 = vunpack.c.l.b16 %v161
    %v419 = vunpack.c.l.b16 %v162
    %v420 = vunpack.c.l.b16 %v163
    %v421 = vunpack.c.l.b16 %v164
    %v422 = vunpack.c.l.b16 %v165
    %v423 = vunpack.c.l.b16 %v166
    %v424 = vunpack.c.l.b16 %v167
    %v425 = vunpack.c.l.b16 %v168
    %v426 = vunpack.c.l.b16 %v169
    %v427 = vunpack.c.l.b16 %v170
    %v428 = vunpack.c.l.b16 %v171
    %v429 = vunpack.c.l.b16 %v172
    %v430 = vunpack.c.l.b16 %v173
    %v431 = vunpack.c.l.b16 %v174
    %v432 = vunpack.c.l.b16 %v175
    %v433 = vunpack.c.l.b16 %v176
    %v434 = vunpack.c.l.b16 %v177
    %v435 = vunpack.c.l.b16 %v178
    %v436 = vunpack.c.l.b16 %v179
    %v437 = vunpack.c.l.b16 %v180
    %v438 = vunpack.c.l.b16 %v181
    %v439 = vunpack.c.l.b16 %v182
    %v440 = vunpack.c.l.b16 %v183
    %v441 = vunpack.c.l.b16 %v184
    %v442 = vunpack.c.l.b16 %v185
    %v443 = vunpack.c.l.b16 %v186
    %v444 = vunpack.c.l.b16 %v187
    %v445 = vunpack.c.l.b16 %v188
    %v446 = vunpack.c.l.b16 %v189
    %v447 = vunpack.c.l.b16 %v190
    %v448 = vunpack.c.l.b16 %v191
    %v449 = vunpack.c.l.b16 %v192
    %v450 = vunpack.c.l.b16 %v193
    %v451 = vunpack.c.l.b16 %v194
    %v452 = vunpack.c.l.b16 %v195
    %v453 = vunpack.c.l.b16 %v196
    %v454 = vunpack.c.l.b16 %v197
    %v455 = vunpack.c.l.b16 %v198
    %v456 = vunpack.c.l.b16 %v199
    %v457 = vunpack.c.l.b16 %v200
    %v458 = vunpack.c.l.b16 %v201
    %v459 = vunpack.c.l.b16 %v202
    %v460 = vunpack.c.l.b16 %v203
    %v461 = vunpack.c.l.b16 %v204
    %v462 = vunpack.c.l.b16 %v205
    %v463 = vpack.c.b16 %v336, %v335
    %v464 = vpack.c.b16 %v338, %v337
    %v465 = vpack.c.b16 %v340, %v339
    %v466 = vpack.c.b16 %v342, %v341
    %v467 = vpack.c.b16 %v344, %v343
    %v468 = vpack.c.b16 %v346, %v345
    %v469 = vpack.c.b16 %v348, %v347
    %v470 = vpack.c.b16 %v350, %v349
    %v471 = vpack.c.b16 %v352, %v351
    %v472 = vpack.c.b16 %v354, %v353
    %v473 = vpack.c.b16 %v356, %v355
    %v474 = vpack.c.b16 %v358, %v357
    %v475 = vpack.c.b16 %v360, %v359
    %v476 = vpack.c.b16 %v362, %v361
    %v477 = vpack.c.b16 %v364, %v363
    %v478 = vpack.c.b16 %v366, %v365
    %v479 = vpack.c.b16 %v368, %v367
    %v480 = vpack.c.b16 %v370, %v369
    %v481 = vpack.c.b16 %v372, %v371
    %v482 = vpack.c.b16 %v374, %v373
    %v483 = vpack.c.b16 %v376, %v375
    %v484 = vpack.c.b16 %v378, %v377
    %v485 = vpack.c.b16 %v380, %v379
    %v486 = vpack.c.b16 %v382, %v381
    %v487 = vpack.c.b16 %v384, %v383
    %v488 = vpack.c.b16 %v386, %v385
    %v489 = vpack.c.b16 %v388, %v387
    %v490 = vpack.c.b16 %v390, %v389
    %v491 = vpack.c.b16 %v392, %v391
    %v492 = vpack.c.b16 %v394, %v393
    %v493 = vpack.c.b16 %v396, %v395
    %v494 = vpack.c.b16 %v398, %v397
    %v495 = vpack.c.b16 %v400, %v399
    %v496 = vpack.c.b16 %v402, %v401
    %v497 = vpack.c.b16 %v404, %v403
    %v498 = vpack.c.b16 %v406, %v405
    %v499 = vpack.c.b16 %v408, %v407
    %v500 = vpack.c.b16 %v410, %v409
    %v501 = vpack.c.b16 %v412, %v411
    %v502 = vpack.c.b16 %v414, %v413
    %v503 = vpack.c.b16 %v416, %v415
    %v504 = vpack.c.b16 %v418, %v417
    %v505 = vpack.c.b16 %v420, %v419
    %v506 = vpack.c.b16 %v422, %v421
    %v507 = vpack.c.b16 %v424, %v423
    %v508 = vpack.c.b16 %v426, %v425
    %v509 = vpack.c.b16 %v428, %v427
    %v510 = vpack.c.b16 %v430, %v429
    %v511 = vpack.c.b16 %v432, %v431
    %v512 = vpack.c.b16 %v434, %v433
    %v513 = vpack.c.b16 %v436, %v435
    %v514 = vpack.c.b16 %v438, %v437
    %v515 = vpack.c.b16 %v440, %v439
    %v516 = vpack.c.b16 %v442, %v441
    %v517 = vpack.c.b16 %v444, %v443
    %v518 = vpack.c.b16 %v446, %v445
    %v519 = vpack.c.b16 %v448, %v447
    %v520 = vpack.c.b16 %v450, %v449
    %v521 = vpack.c.b16 %v452, %v451
    %v522 = vpack.c.b16 %v454, %v453
    %v523 = vpack.c.b16 %v456, %v455
    %v524 = vpack.c.b16 %v458, %v457
    %v525 = vpack.c.b16 %v460, %v459
    %v526 = vpack.c.b16 %v462, %v461
    %591 = vmatpush.bf16.msra.mxu0 %v470
    %592 = vmatpush.bf16.msra.mxu0 %v469
    %593 = vmatpush.bf16.msra.mxu0 %v468
    %594 = vmatpush.bf16.msra.mxu0 %v467
    %595 = vmatpush.bf16.msra.mxu0 %v466
    %596 = vmatpush.bf16.msra.mxu0 %v465
    %597 = vmatpush.bf16.msra.mxu0 %v464
    %598 = vmatpush.bf16.msra.mxu0 %v463
    %599 = vmatmul.bf16.gmra.mxu0 %v65
    %v600 = vpop.f32.mrf.mxu0
    %v601 = vadd.f32 0.0, %v600
    %v602 = vpop.f32.mrf.mxu0
    %603 = vdwg.mxu0
    %604 = vmatpush.bf16.msra.mxu0 %v478
    %605 = vmatpush.bf16.msra.mxu0 %v477
    %606 = vmatpush.bf16.msra.mxu0 %v476
    %607 = vmatpush.bf16.msra.mxu0 %v475
    %608 = vmatpush.bf16.msra.mxu0 %v474
    %609 = vmatpush.bf16.msra.mxu0 %v473
    %610 = vmatpush.bf16.msra.mxu0 %v472
    %611 = vmatpush.bf16.msra.mxu0 %v471
    %612 = vmatmul.bf16.gmra.mxu0 %v66
    %v613 = vpop.f32.mrf.mxu0
    %v614 = vadd.f32 %v601, %v613
    %v615 = vpop.f32.mrf.mxu0
    %616 = vdwg.mxu0
    %617 = vmatpush.bf16.msra.mxu0 %v486
    %618 = vmatpush.bf16.msra.mxu0 %v485
    %619 = vmatpush.bf16.msra.mxu0 %v484
    %620 = vmatpush.bf16.msra.mxu0 %v483
    %621 = vmatpush.bf16.msra.mxu0 %v482
    %622 = vmatpush.bf16.msra.mxu0 %v481
    %623 = vmatpush.bf16.msra.mxu0 %v480
    %624 = vmatpush.bf16.msra.mxu0 %v479
    %625 = vmatmul.bf16.gmra.mxu0 %v67
    %v626 = vpop.f32.mrf.mxu0
    %v627 = vadd.f32 %v614, %v626
    %v628 = vpop.f32.mrf.mxu0
    %629 = vdwg.mxu0
    %630 = vmatpush.bf16.msra.mxu0 %v494
    %631 = vmatpush.bf16.msra.mxu0 %v493
    %632 = vmatpush.bf16.msra.mxu0 %v492
    %633 = vmatpush.bf16.msra.mxu0 %v491
    %634 = vmatpush.bf16.msra.mxu0 %v490
    %635 = vmatpush.bf16.msra.mxu0 %v489
    %636 = vmatpush.bf16.msra.mxu0 %v488
    %637 = vmatpush.bf16.msra.mxu0 %v487
    %638 = vmatmul.bf16.gmra.mxu0 %v68
    %v639 = vpop.f32.mrf.mxu0
    %v640 = vadd.f32 %v627, %v639
    %v641 = vpop.f32.mrf.mxu0
    %642 = vdwg.mxu0
    %643 = vmatpush.bf16.msra.mxu0 %v502
    %644 = vmatpush.bf16.msra.mxu0 %v501
    %645 = vmatpush.bf16.msra.mxu0 %v500
    %646 = vmatpush.bf16.msra.mxu0 %v499
    %647 = vmatpush.bf16.msra.mxu0 %v498
    %648 = vmatpush.bf16.msra.mxu0 %v497
    %649 = vmatpush.bf16.msra.mxu0 %v496
    %650 = vmatpush.bf16.msra.mxu0 %v495
    %651 = vmatmul.bf16.gmra.mxu0 %v69
    %v652 = vpop.f32.mrf.mxu0
    %v653 = vadd.f32 %v640, %v652
    %v654 = vpop.f32.mrf.mxu0
    %655 = vdwg.mxu0
    %656 = vmatpush.bf16.msra.mxu0 %v510
    %657 = vmatpush.bf16.msra.mxu0 %v509
    %658 = vmatpush.bf16.msra.mxu0 %v508
    %659 = vmatpush.bf16.msra.mxu0 %v507
    %660 = vmatpush.bf16.msra.mxu0 %v506
    %661 = vmatpush.bf16.msra.mxu0 %v505
    %662 = vmatpush.bf16.msra.mxu0 %v504
    %663 = vmatpush.bf16.msra.mxu0 %v503
    %664 = vmatmul.bf16.gmra.mxu0 %v70
    %v665 = vpop.f32.mrf.mxu0
    %v666 = vadd.f32 %v653, %v665
    %v667 = vpop.f32.mrf.mxu0
    %668 = vdwg.mxu0
    %669 = vmatpush.bf16.msra.mxu0 %v518
    %670 = vmatpush.bf16.msra.mxu0 %v517
    %671 = vmatpush.bf16.msra.mxu0 %v516
    %672 = vmatpush.bf16.msra.mxu0 %v515
    %673 = vmatpush.bf16.msra.mxu0 %v514
    %674 = vmatpush.bf16.msra.mxu0 %v513
    %675 = vmatpush.bf16.msra.mxu0 %v512
    %676 = vmatpush.bf16.msra.mxu0 %v511
    %677 = vmatmul.bf16.gmra.mxu0 %v71
    %v678 = vpop.f32.mrf.mxu0
    %v679 = vadd.f32 %v666, %v678
    %v680 = vpop.f32.mrf.mxu0
    %681 = vdwg.mxu0
    %682 = vmatpush.bf16.msra.mxu0 %v526
    %683 = vmatpush.bf16.msra.mxu0 %v525
    %684 = vmatpush.bf16.msra.mxu0 %v524
    %685 = vmatpush.bf16.msra.mxu0 %v523
    %686 = vmatpush.bf16.msra.mxu0 %v522
    %687 = vmatpush.bf16.msra.mxu0 %v521
    %688 = vmatpush.bf16.msra.mxu0 %v520
    %689 = vmatpush.bf16.msra.mxu0 %v519
    %690 = vmatmul.bf16.gmra.mxu0 %v72
    %v691 = vpop.f32.mrf.mxu0
    %v692 = vadd.f32 %v679, %v691
    %v693 = vpop.f32.mrf.mxu0
    %694 = vdwg.mxu0
    %v695 = vadd.f32 %v206, %v692
    %vm696 = vcmask 254976
    %697 = vst.msk [vmem:[#allocation2] sm:$0x3] %vm696, %v695
    // Predicated region
    $region42: #{tpu_custom_call.1} parent=1 // pred_check
      %p698 = pneg %p36
    $region43: #{tpu_custom_call.1} parent=1 // pred_check_branch
      %700 = sbr.rel (%p698) target = $region45
    $region44: #{tpu_custom_call.1} parent=1 // pred_region
      %v701 = vld [vmem:[#allocation2] sm:$0x3]
      %v702 = vld [vmem:[%s2] sm:$0x1]
      %v704 = vperm.slane %v702, 0
      %v706 = vadd.f32 %v701, %v704
      %v707 = vsel %vm696, %v706, 0.0
      %708 = vadd.xlane.f32.xlu0 %v707
      %v709 = vpop.xlane.xlu0 %708
      %v710 = vrcp.pop 32.0
      %v711 = vmul.f32 32.0, %v710
      %v712 = vsub.f32 1.0, %v711
      %v713 = vmul.f32 %v710, %v712
      %v714 = vadd.f32 %v710, %v713
      %vm715 = vweird.f32 %v710
      %v716 = vsel %vm715, %v710, %v714
      %v717 = vmul.f32 %v709, %v716
      %v718 = vsub.f32 %v706, %v717
      %v719 = vmul.f32 %v718, %v718
      %v720 = vsel %vm696, %v719, 0.0
      %721 = vadd.xlane.f32.xlu0 %v720
      %v722 = vpop.xlane.xlu0 %721
      %v723 = vmul.f32 %v722, %v716
      %v724 = vadd.f32 %v723, 1e-12
      %v725 = vrsqrt.pop %v724
      %v726 = vmul.f32 %v725, %v724
      %v727 = vmul.f32 %v726, %v725
      %v728 = vmul.f32 0.5, %v727
      %v729 = vsub.f32 1.5, %v728
      %v730 = vmul.f32 %v725, %v729
      %vm731 = vweird.f32 %v724
      %vm732 = vweird.f32 %v725
      %vm733 = vmor %vm731, %vm732
      %v734 = vsel %vm733, %v725, %v730
      %v735 = vmul.f32 %v718, %v734
      %v736 = vld [vmem:[%s3] sm:$0x1]
      %v738 = vperm.slane %v736, 0
      %v740 = vmul.f32 %v735, %v738
      %v741 = vld [vmem:[%s4] sm:$0x1]
      %v743 = vperm.slane %v741, 0
      %v745 = vadd.f32 %v740, %v743
      %v746 = vld [vmem:[%s5] sm:$0xff]
      %v747 = vld [vmem:[%s5 + $0x8] sm:$0xff]
      %v748 = vld [vmem:[%s5 + $0x10] sm:$0xff]
      %v749 = vld [vmem:[%s5 + $0x18] sm:$0xff]
      %v750 = vld [vmem:[%s6] sm:$0x1]
      %v752 = vperm.slane %v750, 0
      %vm754 = vcmask 261120
      %v756 = vsel %vm754, %v745, 0
      %758 = vmatpush.msra.mxu0 0.0
      %759 = vmatpush.msra.mxu0 0.0
      %760 = vmatpush.msra.mxu0 0.0
      %761 = vmatpush.msra.mxu0 0.0
      %762 = vmatpush.msra.mxu0 0.0
      %763 = vmatpush.msra.mxu0 0.0
      %764 = vmatpush.msra.mxu0 0.0
      %765 = vmatpush.msra.mxu0 0.0
      %766 = vmatpush.msra.mxu0 0.0
      %767 = vmatpush.msra.mxu0 0.0
      %768 = vmatpush.msra.mxu0 0.0
      %769 = vmatpush.msra.mxu0 0.0
      %770 = vmatpush.msra.mxu0 %v749
      %771 = vmatpush.msra.mxu0 %v748
      %772 = vmatpush.msra.mxu0 %v747
      %773 = vmatpush.msra.mxu0 %v746
      %774 = vmatmul.f32.gmra.mxu0 %v756
      %v775 = vpop.f32.mrf.mxu0
      %v776 = vadd.f32 %v752, %v775
      %777 = vdwg.mxu0
      %v778 = vand.u32 2147483647, %v776
      %vm779 = vcmp.le.f32.partialorder %v778, 0.7853982
      %vm780 = vcmp.lt.s32.totalorder %v776, 0
      %v781 = vand.u32 %v776, 2139095040
      %v782 = vshrl.u32 %v781, 23
      %v783 = vsub.s32 %v782, 127
      %v784 = vand.u32 2147483647, %v776
      %v785 = vand.u32 %v784, 8388607
      %v786 = vor.u32 %v785, 8388608
      %v787 = vsub.s32 0, %v786
      %v788 = vadd.s32 %v783, 1
      %vm789 = vcmp.gt.s32.totalorder %v788, 0
      %v790 = vsel %vm789, %v788, 0
      %v791 = vshrl.u32 %v790, 5
      %v792 = vand.u32 %v790, 31
      %v793 = vsub.s32 32, %v792
      %v794 = vshrl.u32 683565275, %v793
      %v795 = vshll.u32 683565275, %v792
      %v796 = vshrl.u32 2475754826, %v793
      %v797 = vor.u32 %v795, %v796
      %v798 = vshll.u32 2475754826, %v792
      %v799 = vshrl.u32 2131351028, %v793
      %v800 = vor.u32 %v798, %v799
      %v801 = vshll.u32 2131351028, %v792
      %v802 = vshrl.u32 2102212464, %v793
      %v803 = vor.u32 %v801, %v802
      %v804 = vshll.u32 2102212464, %v792
      %v805 = vshrl.u32 920167782, %v793
      %v806 = vor.u32 %v804, %v805
      %v807 = vshll.u32 920167782, %v792
      %v808 = vshrl.u32 1326507024, %v793
      %v809 = vor.u32 %v807, %v808
      %vm810 = vcmp.lt.s32.totalorder %v791, 1
      %vm811 = vcmp.lt.s32.totalorder %v791, 2
      %vm812 = vcmp.lt.s32.totalorder %v791, 3
      %vm813 = vcmp.lt.s32.totalorder %v791, 4
      %v814 = vsel %vm810, %v794, %v797
      %v815 = vsel %vm813, %v803, 2102212464
      %v816 = vsel %vm812, %v800, %v815
      %v817 = vsel %vm811, %v814, %v816
      %v818 = vsel %vm810, %v797, %v800
      %v819 = vsel %vm813, %v806, 920167782
      %v820 = vsel %vm812, %v803, %v819
      %v821 = vsel %vm811, %v818, %v820
      %v822 = vsel %vm810, %v800, %v803
      %v823 = vsel %vm813, %v809, 1326507024
      %v824 = vsel %vm812, %v806, %v823
      %v825 = vsel %vm811, %v822, %v824
      %v826 = vshll.u32 %v786, 8
      %v827 = vand.u32 %v826, 65535
      %v828 = vshrl.u32 %v826, 16
      %v829 = vand.u32 %v825, 65535
      %v830 = vshrl.u32 %v825, 16
      %v831 = vmul.u32 %v827, %v829
      %v832 = vmul.u32 %v827, %v830
      %v833 = vmul.u32 %v828, %v829
      %v834 = vmul.u32 %v828, %v830
      %v835 = vshll.u32 %v832, 16
      %v836 = vshrl.u32 %v832, 16
      %v837 = vshll.u32 %v833, 16
      %v838 = vshrl.u32 %v833, 16
      %vm839 = vc.u32 %v831, %v835
      %v840 = vsel %vm839, 1, 0
      %v841 = vadd.s32 %v831, %v835
      %v842 = vadd.s32 %v834, %v840
      %vm843 = vc.u32 %v841, %v837
      %v844 = vsel %vm843, 1, 0
      %v845 = vadd.s32 %v841, %v837
      %v846 = vadd.s32 %v842, %v844
      %v847 = vadd.s32 %v846, %v836
      %v848 = vadd.s32 %v847, %v838
      %v849 = vand.u32 %v826, 65535
      %v850 = vshrl.u32 %v826, 16
      %v851 = vand.u32 %v821, 65535
      %v852 = vshrl.u32 %v821, 16
      %v853 = vmul.u32 %v849, %v851
      %v854 = vmul.u32 %v849, %v852
      %v855 = vmul.u32 %v850, %v851
      %v856 = vmul.u32 %v850, %v852
      %v857 = vshll.u32 %v854, 16
      %v858 = vshrl.u32 %v854, 16
      %v859 = vshll.u32 %v855, 16
      %v860 = vshrl.u32 %v855, 16
      %vm861 = vc.u32 %v853, %v857
      %v862 = vsel %vm861, 1, 0
      %v863 = vadd.s32 %v853, %v857
      %v864 = vadd.s32 %v856, %v862
      %vm865 = vc.u32 %v863, %v859
      %v866 = vsel %vm865, 1, 0
      %v867 = vadd.s32 %v863, %v859
      %v868 = vadd.s32 %v864, %v866
      %v869 = vadd.s32 %v868, %v858
      %v870 = vadd.s32 %v869, %v860
      %v871 = vmul.u32 %v826, %v817
      %v872 = vadd.s32 %v848, %v867
      %vm873 = vc.u32 %v848, %v867
      %v874 = vadd.s32 %v870, 1
      %v875 = vsel %vm873, %v874, %v870
      %v876 = vadd.s32 %v871, %v875
      %v877 = vadd.s32 %v876, 536870912
      %v878 = vshrl.u32 %v877, 30
      %v879 = vshll.u32 %v878, 30
      %v880 = vsub.s32 %v876, %v879
      %vm881 = vcmp.lt.s32.totalorder %v880, 0
      %v882 = vsub.s32 0, %v880
      %v883 = vsel %vm881, %v882, %v880
      %v884 = vclz %v883
      %v885 = vsub.s32 %v884, 2
      %vm886 = vcmp.gt.s32.totalorder 0, %v885
      %v887 = vsel %vm886, 0, %v885
      %v888 = vsub.s32 32, %v887
      %v889 = vshll.u32 %v880, %v887
      %v890 = vshrl.u32 %v872, %v888
      %v891 = vor.u32 %v889, %v890
      %v892 = vsub.s32 4294967266, %v887
      %v893 = vadd.s32 %v892, 127
      %v894 = vshll.u32 %v893, 23
      %v895 = vor.u32 4788187, %v894
      %v896 = vand.u32 2147483647, %v895
      %v898 = vcvt.s32.f32 %v891
      %v899 = vmul.f32 %v898, %v896
      %v900 = vxor.u32 %v899, 2147483648
      %v901 = vsel %vm780, %v900, %v899
      %v902 = vsub.s32 4, %v878
      %v903 = vsel %vm780, %v902, %v878
      %v904 = vsel %vm779, %v776, %v901
      %v905 = vsel %vm779, 0, %v903
      %v906 = vmul.f32 %v904, %v904
      %v907 = vmul.f32 %v906, -0.001358992
      %v908 = vadd.f32 %v907, 0.041655596
      %v909 = vmul.f32 %v906, %v908
      %v910 = vadd.f32 %v909, -0.4999988
      %v911 = vmul.f32 %v906, %v910
      %v912 = vadd.f32 1.0, %v911
      %v913 = vmul.f32 %v904, %v904
      %v914 = vmul.f32 %v913, -0.00019511016
      %v915 = vadd.f32 %v914, 0.008332121
      %v916 = vmul.f32 %v913, %v915
      %v917 = vadd.f32 %v916, -0.16666654
      %v918 = vmul.f32 %v913, %v917
      %v919 = vadd.f32 %v918, 1.0
      %v920 = vmul.f32 %v919, %v904
      %vm921 = vweird.f32 %v776
      %v922 = vand.u32 %v905, 3
      %vm923 = vcmp.lt.s32.totalorder %v922, 2
      %vm924 = vcmp.eq.s32.totalorder %v922, 0
      %v925 = vxor.u32 %v920, 2147483648
      %v926 = vsel %vm924, %v912, %v925
      %vm927 = vcmp.eq.s32.totalorder %v922, 2
      %v928 = vxor.u32 %v912, 2147483648
      %v929 = vsel %vm927, %v928, %v920
      %v930 = vsel %vm923, %v926, %v929
      %v931 = vsel %vm921, nan, %v930
      %932 = vst [vmem:[#allocation5] sm:$0x3] %v931
      %v933 = vld [vmem:[%s7] sm:$0xff]
      %v934 = vld [vmem:[%s7 + $0x8] sm:$0xff]
      %v935 = vld [vmem:[%s7 + $0x10] sm:$0xff]
      %v936 = vld [vmem:[%s7 + $0x18] sm:$0xff]
      %v937 = vld [vmem:[%s7 + $0x20] sm:$0xff]
      %v938 = vld [vmem:[%s7 + $0x28] sm:$0xff]
      %v939 = vld [vmem:[%s7 + $0x30] sm:$0xff]
      %v940 = vld [vmem:[%s7 + $0x38] sm:$0xff]
      %v941 = vld [vmem:[%s7 + $0x40] sm:$0xff]
      %v942 = vld [vmem:[%s7 + $0x48] sm:$0xff]
      %v943 = vld [vmem:[%s7 + $0x50] sm:$0xff]
      %v944 = vld [vmem:[%s7 + $0x58] sm:$0xff]
      %v945 = vld [vmem:[%s7 + $0x60] sm:$0xff]
      %v946 = vld [vmem:[%s7 + $0x68] sm:$0xff]
      %v947 = vld [vmem:[%s7 + $0x70] sm:$0xff]
      %v948 = vld [vmem:[%s7 + $0x78] sm:$0xff]
      %v949 = vld [vmem:[%s8] sm:$0x1]
      %v951 = vperm.slane %v949, 0
      %953 = vmatpush.msra.mxu0 %v948
      %954 = vmatpush.msra.mxu0 %v947
      %955 = vmatpush.msra.mxu0 %v946
      %956 = vmatpush.msra.mxu0 %v945
      %957 = vmatpush.msra.mxu0 %v944
      %958 = vmatpush.msra.mxu0 %v943
      %959 = vmatpush.msra.mxu0 %v942
      %960 = vmatpush.msra.mxu0 %v941
      %961 = vmatpush.msra.mxu0 %v940
      %962 = vmatpush.msra.mxu0 %v939
      %963 = vmatpush.msra.mxu0 %v938
      %964 = vmatpush.msra.mxu0 %v937
      %965 = vmatpush.msra.mxu0 %v936
      %966 = vmatpush.msra.mxu0 %v935
      %967 = vmatpush.msra.mxu0 %v934
      %968 = vmatpush.msra.mxu0 %v933
      %969 = vmatmul.f32.gmra.mxu0 %v931
      %v970 = vpop.f32.mrf.mxu0
      %v971 = vadd.f32 %v951, %v970
      %972 = vdwg.mxu0
      %vm973 = vcmask 58368
      %974 = vst.msk [vmem:[#allocation3] sm:$0x3] %vm973, %v971
    $region45: #{tpu_custom_call.1} parent=1 // pred_fallthru
      _
    // Predicated region
    $region46: #{tpu_custom_call.1} parent=1 // pred_check
      _
    $region47: #{tpu_custom_call.1} parent=1 // pred_check_branch
      %976 = sbr.rel (0) target = $region49
    $region48: #{tpu_custom_call.1} parent=1 // pred_region
      %978 = vsyncadd [#allocation4], 0
      %s980 = sshll.u32 [#allocation3], 4
      %s981 = int_to_ptr.vmem [resolvable:$true] %s980
      %s982 = sshll.u32 %s9, 4
      %s983 = int_to_ptr.hbm [resolvable:$true] %s982
      %985 = dma.vmem_to_hbm [thread:$0]  %s981, 32, %s983, [#allocation4]
    $region49: #{tpu_custom_call.1} parent=1 // pred_fallthru
      _
    // Predicated region
    $region50: #{tpu_custom_call.1} parent=1 // pred_check
      _
    $region51: #{tpu_custom_call.1} parent=1 // pred_check_branch
      %987 = sbr.rel (0) target = $region53
    $region52: #{tpu_custom_call.1} parent=1 // pred_region
      %989 = vsyncadd [#allocation6], 0
      %s991 = sshll.u32 [#allocation5], 4
      %s992 = int_to_ptr.vmem [resolvable:$true] %s991
      %s993 = sshll.u32 %s10, 4
      %s994 = int_to_ptr.hbm [resolvable:$true] %s993
      %996 = dma.vmem_to_hbm [thread:$0]  %s992, 32, %s994, [#allocation6]
    $region53: #{tpu_custom_call.1} parent=1 // pred_fallthru
      _
    // Predicated region
    $region54: #{tpu_custom_call.1} parent=1 // pred_check
      _
    $region55: #{tpu_custom_call.1} parent=1 // pred_check_branch
      %998 = sbr.rel (0) target = $region57
    $region56: #{tpu_custom_call.1} parent=1 // pred_region
      %1000 = dma.done [#allocation4], 32
    $region57: #{tpu_custom_call.1} parent=1 // pred_fallthru
      _
    // Predicated region
    $region58: #{tpu_custom_call.1} parent=1 // pred_check
      _
    $region59: #{tpu_custom_call.1} parent=1 // pred_check_branch
      %1002 = sbr.rel (0) target = $region61
    $region60: #{tpu_custom_call.1} parent=1 // pred_region
      %1004 = dma.done [#allocation6], 32
    $region61: #{tpu_custom_call.1} parent=1 // pred_fallthru
      _
    %1005 = vsyncpa [#allocation4], 1
    %1006 = vsyncpa [#allocation6], 1

</llo_original>
